<compile_context>
chip_gen: v5e
topology: v5e:2x2
jax: 0.10.0
libtpu: 0.0.40
codegen_flags: <defaults>
</compile_context>

<pallas_src>
import itertools

import jax
import jax.numpy as jnp
from jax.experimental import pallas as pl
from jax.experimental.pallas import tpu as pltpu


# ---------------------------------------------------------------------------
# Kernels
# ---------------------------------------------------------------------------
def _linear_bias_single_block_kernel(x_ref, w_ref, b_ref, o_ref):
    # Whole (padded, lane-dense) operands live in VMEM: one MXU matmul with
    # f32 accumulation + a single broadcasted bias add (VPU), one dense store.
    acc = jnp.dot(x_ref[...], w_ref[...], preferred_element_type=jnp.float32)
    o_ref[...] = (acc + b_ref[...]).astype(o_ref.dtype)


def _linear_bias_tiled_kernel(x_ref, w_ref, b_ref, o_ref, acc_ref):
    # grid = (M//tm, N//tn, K//tk); K is the last ("arbitrary") axis.
    k = pl.program_id(2)

    @pl.when(k == 0)
    def _():
        acc_ref[...] = jnp.zeros_like(acc_ref)

    acc_ref[...] += jnp.dot(
        x_ref[...], w_ref[...], preferred_element_type=jnp.float32
    )

    @pl.when(k == pl.num_programs(2) - 1)
    def _():
        # Bias added exactly once per output tile, only in the finalize step.
        o_ref[...] = (acc_ref[...] + b_ref[...]).astype(o_ref.dtype)


# ---------------------------------------------------------------------------
# Wrapper
# ---------------------------------------------------------------------------
def _round_up(v, m):
    return (v + m - 1) // m * m


def _pad2d(a, rows, cols):
    r, c = a.shape
    if r == rows and c == cols:
        return a
    return jnp.pad(a, ((0, rows - r), (0, cols - c)))


# Conservative single-block cutoff: total resident f32 bytes in VMEM.
_SINGLE_BLOCK_BYTES = 8 * 1024 * 1024


def pallas_linear(x, w, b, *, tm=256, tn=256, tk=512, force_tiled=False):
    """Compute x @ w + b with Pallas TPU kernels.

    x: (M, K) float32, w: (K, N) float32, b: (N,) float32.
    Operands are zero-padded to lane-dense shapes (K, N -> multiples of 128,
    M -> multiple of 8); the result is sliced back to (M, N).
    """
    M, K = x.shape
    K2, N = w.shape
    assert K == K2, (K, K2)
    b2 = b.reshape(1, N)

    # Lane-dense padding (zero padding is exact for matmul + bias).
    m_pad = _round_up(M, 8)
    k_pad = _round_up(K, 128)
    n_pad = _round_up(N, 128)

    cost = pl.CostEstimate(
        flops=2 * M * K * N,
        transcendentals=0,
        bytes_accessed=4 * (M * K + K * N + M * N + N),
    )

    footprint = 4 * (m_pad * k_pad + k_pad * n_pad + m_pad * n_pad + n_pad)
    use_single_block = (footprint <= _SINGLE_BLOCK_BYTES) and not force_tiled

    if use_single_block:
        xp = _pad2d(x, m_pad, k_pad)
        wp = _pad2d(w, k_pad, n_pad)
        bp = _pad2d(b2, 1, n_pad)

        out_pad = pl.pallas_call(
            _linear_bias_single_block_kernel,
            out_shape=jax.ShapeDtypeStruct((m_pad, n_pad), x.dtype),
            in_specs=[
                pl.BlockSpec(memory_space=pltpu.MemorySpace.VMEM),
                pl.BlockSpec(memory_space=pltpu.MemorySpace.VMEM),
                pl.BlockSpec(memory_space=pltpu.MemorySpace.VMEM),
            ],
            out_specs=pl.BlockSpec(memory_space=pltpu.MemorySpace.VMEM),
            compiler_params=pltpu.CompilerParams(vmem_limit_bytes=32 << 20),
            cost_estimate=cost,
        )(xp, wp, bp)
        if (m_pad, n_pad) == (M, N):
            return out_pad
        return out_pad[:M, :N]

    # ---- tiled path (realistic sizes) ----
    tm = min(tm, m_pad)  # multiple of 8 (m_pad is)
    tn = min(tn, n_pad)  # multiple of 128 (n_pad is)
    tk = min(tk, k_pad)  # multiple of 128 (k_pad is)

    m_t = _round_up(m_pad, tm)
    k_t = _round_up(k_pad, tk)
    n_t = _round_up(n_pad, tn)

    xp = _pad2d(x, m_t, k_t)
    wp = _pad2d(w, k_t, n_t)
    bp = _pad2d(b2, 1, n_t)

    grid = (m_t // tm, n_t // tn, k_t // tk)

    out_pad = pl.pallas_call(
        _linear_bias_tiled_kernel,
        out_shape=jax.ShapeDtypeStruct((m_t, n_t), x.dtype),
        grid_spec=pltpu.PrefetchScalarGridSpec(
            num_scalar_prefetch=0,
            grid=grid,
            in_specs=[
                pl.BlockSpec((tm, tk), lambda i, j, k: (i, k)),
                pl.BlockSpec((tk, tn), lambda i, j, k: (k, j)),
                pl.BlockSpec((1, tn), lambda i, j, k: (0, j)),
            ],
            out_specs=pl.BlockSpec((tm, tn), lambda i, j, k: (i, j)),
            scratch_shapes=[pltpu.VMEM((tm, tn), jnp.float32)],
        ),
        compiler_params=pltpu.CompilerParams(
            # M/N shard across TensorCores (v7x megacore); K is the reduction.
            dimension_semantics=("parallel", "parallel", "arbitrary"),
            # Fits v7x's 64 MiB physical / 32 MiB scoped VMEM with 2-deep
            # double buffering at the default 256/256/512 f32 tiles.
            vmem_limit_bytes=32 << 20,
        ),
        cost_estimate=cost,
    )(xp, wp, bp)
    if (m_t, n_t) == (M, N):
        return out_pad
    return out_pad[:M, :N]


# ---------------------------------------------------------------------------
# FuncModule analogue: forward(*args) = f(*args, *params)
# ---------------------------------------------------------------------------
class FuncModule:
    def __init__(self, f, params=None):
        if params is None:
            params = ()
        self.f = f
        self.params = list(params)

    def __call__(self, *args):
        return self.f(*itertools.chain(args, self.params))


if __name__ == "__main__":
    # Primary (small) shapes consistent with a linear forward:
    # batch/seq = 8, hidden 32 -> 64.  Uses the single-block path.
    M, K, N = 8, 32, 64

    key = jax.random.PRNGKey(0)
    kx, kw, kb = jax.random.split(key, 3)

    x = jax.random.normal(kx, (M, K), dtype=jnp.float32)
    w = jax.random.normal(kw, (K, N), dtype=jnp.float32) * 0.05
    b = jax.random.normal(kb, (N,), dtype=jnp.float32) * 0.1

    module = FuncModule(pallas_linear, params=(w, b))
    out = jax.block_until_ready(module(x))

    ref = x @ w + b
    assert out.shape == (M, N), out.shape
    assert jnp.allclose(out, ref, atol=1e-4, rtol=1e-4), "mismatch vs reference (small)"

    # Secondary check: exercise the tiled K-reduction path (grid (2, 2, 3))
    # with deliberately small tiles so accumulation across K steps is tested.
    M2, K2, N2 = 128, 384, 256
    k2x, k2w, k2b = jax.random.split(jax.random.PRNGKey(0), 3)
    x2 = jax.random.normal(k2x, (M2, K2), dtype=jnp.float32)
    w2 = jax.random.normal(k2w, (K2, N2), dtype=jnp.float32) * 0.05
    b2 = jax.random.normal(k2b, (N2,), dtype=jnp.float32) * 0.1

    out2 = jax.block_until_ready(
        pallas_linear(x2, w2, b2, tm=64, tn=128, tk=128, force_tiled=True)
    )
    ref2 = x2 @ w2 + b2
    assert out2.shape == (M2, N2), out2.shape
    assert jnp.allclose(out2, ref2, atol=5e-3, rtol=5e-3), "mismatch vs reference (tiled)"

    print("KERNEL_OK")
</pallas_src>

<mosaic_0001>
module attributes {stable_mosaic.version = 11 : i64} {
  func.func @_linear_bias_single_block_kernel(%arg0: memref<8x128xf32, #tpu.memory_space<vmem>>, %arg1: memref<128x128xf32, #tpu.memory_space<vmem>>, %arg2: memref<1x128xf32, #tpu.memory_space<vmem>>, %arg3: memref<8x128xf32, #tpu.memory_space<vmem>>) attributes {dimension_semantics = [], scalar_prefetch = 0 : i64, scratch_operands = 0 : i64, tpu.core_type = #tpu.core_type<tc>} {
    %c0 = arith.constant 0 : index
    %c0_0 = arith.constant 0 : index
    %0 = vector.load %arg0[%c0, %c0_0] : memref<8x128xf32, #tpu.memory_space<vmem>>, vector<8x128xf32>
    %c0_1 = arith.constant 0 : index
    %c0_2 = arith.constant 0 : index
    %1 = vector.load %arg1[%c0_1, %c0_2] : memref<128x128xf32, #tpu.memory_space<vmem>>, vector<128x128xf32>
    %cst = arith.constant dense<0.000000e+00> : vector<8x128xf32>
    %2 = tpu.matmul %0, %1, %cst {dimension_numbers = #tpu.dot_dimension_numbers<[1], [0], [0], [1], [0, 0, 1, 1], [], []>} : vector<8x128xf32>, vector<128x128xf32>, vector<8x128xf32> -> vector<8x128xf32>
    %c0_3 = arith.constant 0 : index
    %c0_4 = arith.constant 0 : index
    %3 = vector.load %arg2[%c0_3, %c0_4] : memref<1x128xf32, #tpu.memory_space<vmem>>, vector<1x128xf32>
    %4 = vector.broadcast %3 : vector<1x128xf32> to vector<8x128xf32>
    %5 = arith.addf %2, %4 : vector<8x128xf32>
    %c0_5 = arith.constant 0 : index
    %c0_6 = arith.constant 0 : index
    %6 = vector.load %arg3[%c0_5, %c0_6] : memref<8x128xf32, #tpu.memory_space<vmem>>, vector<8x128xf32>
    tpu.vector_store %arg3[%c0_5, %c0_6], %5 {strides = array<i32>} : memref<8x128xf32, #tpu.memory_space<vmem>>, vector<8x128xf32>,
    return
  }
}

</mosaic_0001>

<llo_original>
// kernel: tpu_custom_call.1
$region0: #{tpu_custom_call.1}
  #allocation0 [shape = 'u32[]', space=smem, size = 0x4, offset = 0x4, fixed_abs, tag = 'smem constant byte address 0x4 - core index']
  #allocation1 [shape = 'u32[72,128]{1,0:T(1,128)}', space=vmem, size = 0x9000, scoped, tag = 'internal scratch']
  %s0 = inlined_call_operand.hbm [shape: f32[8,128], index: 0, kind: input, shape index: {}]
  %s1 = inlined_call_operand.hbm [shape: f32[128,128], index: 1, kind: input, shape index: {}]
  %s2 = inlined_call_operand.vmem [shape: f32[1,128], index: 2, kind: input, shape index: {}]
  %s3 = inlined_call_operand.hbm [shape: f32[8,128], index: 3, kind: output, shape index: {}]
  %s4 = sld [smem:[#allocation0]]
  $region30: #{tpu_custom_call.1} parent=0
    _
  %s6 = ssub.s32 1, %s4
  %s7 = scalar_select 0, %s6, %s4
  $region1: #{tpu_custom_call.1} parent=0
    #allocation2 [shape = 'u8[4096]{0}', space=vmem, size = 0x1000, scoped, tag = 'input window, operand 0, single buffered']
    #allocation3 [shape = 's32[1]{0}', space=sflag, size = 0x4, scoped, tag = 'scoped memory for tpu_custom_call.1']
    #allocation4 [shape = 's32[1]{0}', space=sflag, size = 0x4, scoped, tag = 'scoped memory for tpu_custom_call.1']
    #allocation5 [shape = 'u8[65536]{0}', space=vmem, size = 0x10000, scoped, tag = 'input window, operand 1, single buffered']
    #allocation6 [shape = 's32[1]{0}', space=sflag, size = 0x4, scoped, tag = 'scoped memory for tpu_custom_call.1']
    #allocation7 [shape = 'u8[4096]{0}', space=vmem, size = 0x1000, scoped, tag = 'output window, operand 0, single buffered']
    %8 = vsyncpa [#allocation3], 0
    %9 = vsyncpa [#allocation6], 0
    %10 = vsyncpa [#allocation4], 0
    // Predicated region
    $region2: #{tpu_custom_call.1} parent=1 // pred_check
      _
    $region3: #{tpu_custom_call.1} parent=1 // pred_check_branch
      %12 = sbr.rel (0) target = $region5
    $region4: #{tpu_custom_call.1} parent=1 // pred_region
      %14 = vsyncadd [#allocation3], 0
      %s16 = sshll.u32 %s0, 4
      %s17 = int_to_ptr.hbm [resolvable:$true] %s16
      %s18 = sshll.u32 [#allocation2], 4
      %s19 = int_to_ptr.vmem [resolvable:$true] %s18
      %21 = dma.hbm_to_vmem [thread:$0]  %s17, 128, %s19, [#allocation3]
    $region5: #{tpu_custom_call.1} parent=1 // pred_fallthru
      _
    // Predicated region
    $region6: #{tpu_custom_call.1} parent=1 // pred_check
      _
    $region7: #{tpu_custom_call.1} parent=1 // pred_check_branch
      %23 = sbr.rel (0) target = $region9
    $region8: #{tpu_custom_call.1} parent=1 // pred_region
      %25 = vsyncadd [#allocation6], 0
      %s26 = sshll.u32 %s1, 4
      %s27 = int_to_ptr.hbm [resolvable:$true] %s26
      %s28 = sshll.u32 [#allocation5], 4
      %s29 = int_to_ptr.vmem [resolvable:$true] %s28
      %34 = dma.hbm_to_vmem [thread:$0]  %s27, 2048, %s29, [#allocation6], 128, 128, 8
    $region9: #{tpu_custom_call.1} parent=1 // pred_fallthru
      _
    // Predicated region
    $region10: #{tpu_custom_call.1} parent=1 // pred_check
      _
    $region11: #{tpu_custom_call.1} parent=1 // pred_check_branch
      %36 = sbr.rel (0) target = $region13
    $region12: #{tpu_custom_call.1} parent=1 // pred_region
      _
    $region13: #{tpu_custom_call.1} parent=1 // pred_fallthru
      _
    // Predicated region
    $region14: #{tpu_custom_call.1} parent=1 // pred_check
      _
    $region15: #{tpu_custom_call.1} parent=1 // pred_check_branch
      %38 = sbr.rel (0) target = $region17
    $region16: #{tpu_custom_call.1} parent=1 // pred_region
      %40 = dma.done [#allocation3], 128
    $region17: #{tpu_custom_call.1} parent=1 // pred_fallthru
      _
    // Predicated region
    $region18: #{tpu_custom_call.1} parent=1 // pred_check
      _
    $region19: #{tpu_custom_call.1} parent=1 // pred_check_branch
      %42 = sbr.rel (0) target = $region21
    $region20: #{tpu_custom_call.1} parent=1 // pred_region
      %44 = dma.done [#allocation6], 2048
    $region21: #{tpu_custom_call.1} parent=1 // pred_fallthru
      _
    %v45 = vld [vmem:[#allocation2] sm:$0xff]
    %v46 = vld [vmem:[#allocation5] sm:$0xff]
    %v47 = vld [vmem:[#allocation5 + $0x8] sm:$0xff]
    %v48 = vld [vmem:[#allocation5 + $0x10] sm:$0xff]
    %v49 = vld [vmem:[#allocation5 + $0x18] sm:$0xff]
    %v50 = vld [vmem:[#allocation5 + $0x20] sm:$0xff]
    %v51 = vld [vmem:[#allocation5 + $0x28] sm:$0xff]
    %v52 = vld [vmem:[#allocation5 + $0x30] sm:$0xff]
    %v53 = vld [vmem:[#allocation5 + $0x38] sm:$0xff]
    %v54 = vld [vmem:[#allocation5 + $0x40] sm:$0xff]
    %v55 = vld [vmem:[#allocation5 + $0x48] sm:$0xff]
    %v56 = vld [vmem:[#allocation5 + $0x50] sm:$0xff]
    %v57 = vld [vmem:[#allocation5 + $0x58] sm:$0xff]
    %v58 = vld [vmem:[#allocation5 + $0x60] sm:$0xff]
    %v59 = vld [vmem:[#allocation5 + $0x68] sm:$0xff]
    %v60 = vld [vmem:[#allocation5 + $0x70] sm:$0xff]
    %v61 = vld [vmem:[#allocation5 + $0x78] sm:$0xff]
    %v62 = vld [vmem:[%s2] sm:$0x1]
    %v64 = vperm.slane %v62, 0
    %66 = vmatpush.msra.mxu0 %v61
    %67 = vmatpush.msra.mxu0 %v60
    %68 = vmatpush.msra.mxu0 %v59
    %69 = vmatpush.msra.mxu0 %v58
    %70 = vmatpush.msra.mxu0 %v57
    %71 = vmatpush.msra.mxu0 %v56
    %72 = vmatpush.msra.mxu0 %v55
    %73 = vmatpush.msra.mxu0 %v54
    %74 = vmatpush.msra.mxu0 %v53
    %75 = vmatpush.msra.mxu0 %v52
    %76 = vmatpush.msra.mxu0 %v51
    %77 = vmatpush.msra.mxu0 %v50
    %78 = vmatpush.msra.mxu0 %v49
    %79 = vmatpush.msra.mxu0 %v48
    %80 = vmatpush.msra.mxu0 %v47
    %81 = vmatpush.msra.mxu0 %v46
    %82 = vmatmul.f32.gmra.mxu0 %v45
    %v83 = vpop.f32.mrf.mxu0
    %v84 = vadd.f32 %v64, %v83
    %85 = vdwg.mxu0
    %86 = vst [vmem:[#allocation7] sm:$0xff] %v84
    // Predicated region
    $region22: #{tpu_custom_call.1} parent=1 // pred_check
      _
    $region23: #{tpu_custom_call.1} parent=1 // pred_check_branch
      %88 = sbr.rel (0) target = $region25
    $region24: #{tpu_custom_call.1} parent=1 // pred_region
      %90 = vsyncadd [#allocation4], 0
      %s92 = sshll.u32 [#allocation7], 4
      %s93 = int_to_ptr.vmem [resolvable:$true] %s92
      %s94 = sshll.u32 %s3, 4
      %s95 = int_to_ptr.hbm [resolvable:$true] %s94
      %97 = dma.vmem_to_hbm [thread:$0]  %s93, 128, %s95, [#allocation4]
    $region25: #{tpu_custom_call.1} parent=1 // pred_fallthru
      _
    // Predicated region
    $region26: #{tpu_custom_call.1} parent=1 // pred_check
      _
    $region27: #{tpu_custom_call.1} parent=1 // pred_check_branch
      %99 = sbr.rel (0) target = $region29
    $region28: #{tpu_custom_call.1} parent=1 // pred_region
      %101 = dma.done [#allocation4], 128
    $region29: #{tpu_custom_call.1} parent=1 // pred_fallthru
      _
    %102 = vsyncpa [#allocation3], 1
    %103 = vsyncpa [#allocation6], 1
    %104 = vsyncpa [#allocation4], 1

</llo_original>
